<compile_context>
chip_gen: v6e
topology: v6e:2x2x1
jax: 0.10.0
libtpu: 0.0.40
codegen_flags: <defaults>
</compile_context>

<pallas_src>
import jax
import jax.numpy as jnp
from jax.experimental import pallas as pl
from jax.experimental.pallas import tpu as pltpu

NUM_NEURONS_L1 = 400
NUM_NEURONS_L2 = 200

L1_PAD = 512   # 400 -> 512 (lane/MXU friendly)
L2_PAD = 256   # 200 -> 256
OUT_LANES = 8  # narrow lane-dense output; value lives in (every) lane, wrapper takes lane 0


def _round_up(n: int, m: int) -> int:
    return ((n + m - 1) // m) * m


def critic_kernel(x_ref, w1_ref, b1_ref, w2_ref, b2_ref, w3_ref, b3_ref, o_ref):
    # input_layer + ReLU : bf16 MXU inputs, f32 accumulate, f32 epilogue.
    x16 = x_ref[...].astype(jnp.bfloat16)
    l1 = jnp.dot(x16, w1_ref[...], preferred_element_type=jnp.float32) + b1_ref[...]
    l1 = jnp.maximum(l1, 0.0)

    # hidden_layer + ReLU
    l2 = jnp.dot(l1.astype(jnp.bfloat16), w2_ref[...],
                 preferred_element_type=jnp.float32) + b2_ref[...]
    l2 = jnp.maximum(l2, 0.0)

    # output_layer (200 -> 1): VPU multiply + XLU lane reduce in f32.
    val = jnp.sum(l2 * w3_ref[...], axis=-1, keepdims=True)   # (tb, 1)
    o_ref[...] = val + b3_ref[...]                            # broadcast -> (tb, OUT_LANES)


def init_params(key, input_size, output_size=1):
    """Raw f32 params, PyTorch-Linear-like uniform init, stored pre-transposed (in, out)."""
    def linear(k, fan_in, fan_out):
        kw, kb = jax.random.split(k)
        bound = 1.0 / jnp.sqrt(fan_in)
        w = jax.random.uniform(kw, (fan_in, fan_out), jnp.float32, -bound, bound)
        b = jax.random.uniform(kb, (1, fan_out), jnp.float32, -bound, bound)
        return w, b

    keys = jax.random.split(key, 3)
    w1, b1 = linear(keys[0], input_size, NUM_NEURONS_L1)
    w2, b2 = linear(keys[1], NUM_NEURONS_L1, NUM_NEURONS_L2)
    w3, b3 = linear(keys[2], NUM_NEURONS_L2, output_size)
    return dict(w1=w1, b1=b1, w2=w2, b2=b2, w3=w3, b3=b3)


def pack_params(params):
    """Pad/cast raw params once (host side) to kernel-friendly shapes.

    Big-layer weights -> bf16 (MXU inputs); biases and the 200->1 head -> f32
    (they run on VPU/XLU). Zero padding is exact through ReLU and the reduce.
    """
    d_in = params["w1"].shape[0]
    out_size = params["w3"].shape[1]
    assert out_size == 1, "critic value head must be scalar (output_size=1)"

    def pad2(a, rows, cols, dtype):
        out = jnp.zeros((rows, cols), dtype)
        return out.at[: a.shape[0], : a.shape[1]].set(a.astype(dtype))

    return dict(
        w1=pad2(params["w1"], d_in, L1_PAD, jnp.bfloat16),
        b1=pad2(params["b1"], 1, L1_PAD, jnp.float32),
        w2=pad2(params["w2"], L1_PAD, L2_PAD, jnp.bfloat16),
        b2=pad2(params["b2"], 1, L2_PAD, jnp.float32),
        w3=pad2(params["w3"].T, 1, L2_PAD, jnp.float32),              # (1, 256) row
        b3=jnp.full((1, OUT_LANES), params["b3"][0, 0], jnp.float32),  # bias replicated
        in_size=d_in, out_size=out_size,
    )


def critic_forward(x, pp, *, block_b=512):
    """x: (B, input_size) float32. pp: packed params. Returns (B, 1) float32."""
    B, D = x.shape
    assert D == pp["in_size"]
    out_size = pp["out_size"]

    rows = _round_up(B, 8)
    tb = min(block_b, rows)
    # v7x megacore: a single-step grid pins all work to one TC; split if big enough.
    if tb == rows and rows >= 512:
        tb = _round_up(rows // 2, 8)
    grid_n = pl.cdiv(B, tb)
    b_pad = grid_n * tb

    def const_spec(a):
        # Weights/biases: constant index map -> stay VMEM-resident across the grid.
        return pl.BlockSpec(a.shape, lambda i: (0, 0))

    flops = 2 * b_pad * (D * L1_PAD + L1_PAD * L2_PAD + L2_PAD)
    bytes_accessed = (
        4 * B * D + 4 * b_pad * OUT_LANES
        + 2 * (D * L1_PAD + L1_PAD * L2_PAD)
        + 4 * (L1_PAD + L2_PAD + L2_PAD + OUT_LANES)
    )

    out = pl.pallas_call(
        critic_kernel,
        out_shape=jax.ShapeDtypeStruct((b_pad, OUT_LANES), jnp.float32),
        grid=(grid_n,),
        in_specs=[
            pl.BlockSpec((tb, D), lambda i: (i, 0)),   # x passed unpadded
            const_spec(pp["w1"]), const_spec(pp["b1"]),
            const_spec(pp["w2"]), const_spec(pp["b2"]),
            const_spec(pp["w3"]), const_spec(pp["b3"]),
        ],
        out_specs=pl.BlockSpec((tb, OUT_LANES), lambda i: (i, 0)),
        compiler_params=pltpu.CompilerParams(dimension_semantics=("parallel",)),
        cost_estimate=pl.CostEstimate(
            flops=flops, transcendentals=0, bytes_accessed=bytes_accessed
        ),
    )(x, pp["w1"], pp["b1"], pp["w2"], pp["b2"], pp["w3"], pp["b3"])

    # Drop batch padding / garbage rows of a partial last block and the extra lanes.
    return out[:B, :out_size]


def critic_reference(x, p):
    """Reference matching the kernel's numerics (bf16 matmul inputs, f32 accumulate)."""
    bf16 = jnp.bfloat16
    l1 = jnp.maximum(
        jnp.dot(x.astype(bf16), p["w1"].astype(bf16),
                preferred_element_type=jnp.float32) + p["b1"], 0.0)
    l2 = jnp.maximum(
        jnp.dot(l1.astype(bf16), p["w2"].astype(bf16),
                preferred_element_type=jnp.float32) + p["b2"], 0.0)
    return l2 @ p["w3"] + p["b3"]


if __name__ == "__main__":
    key = jax.random.PRNGKey(0)
    k_param, k_x = jax.random.split(key)

    batch = 8
    input_size = 8      # e.g. LunarLanderContinuous observation dim
    output_size = 1     # scalar state value

    params = init_params(k_param, input_size, output_size)
    packed = pack_params(params)
    x = jax.random.normal(k_x, (batch, input_size), jnp.float32)

    value = critic_forward(x, packed)
    jax.block_until_ready(value)

    ref_value = critic_reference(x, params)
    assert value.shape == (batch, output_size)
    assert jnp.allclose(value, ref_value, atol=2e-3, rtol=2e-3)

    print("KERNEL_OK")
</pallas_src>

<mosaic_0001>
module attributes {stable_mosaic.version = 11 : i64} {
  func.func @critic_kernel(%arg0: i32, %arg1: memref<8x8xf32, #tpu.memory_space<vmem>>, %arg2: memref<8x512xbf16, #tpu.memory_space<vmem>>, %arg3: memref<1x512xf32, #tpu.memory_space<vmem>>, %arg4: memref<512x256xbf16, #tpu.memory_space<vmem>>, %arg5: memref<1x256xf32, #tpu.memory_space<vmem>>, %arg6: memref<1x256xf32, #tpu.memory_space<vmem>>, %arg7: memref<1x8xf32, #tpu.memory_space<vmem>>, %arg8: memref<8x8xf32, #tpu.memory_space<vmem>>) attributes {dimension_semantics = [#tpu.dimension_semantics<parallel>], iteration_bounds = array<i64: 1>, scalar_prefetch = 0 : i64, scratch_operands = 0 : i64, tpu.core_type = #tpu.core_type<tc>, window_params = [{transform_indices = @transform_0, window_bounds = array<i64: 8, 8>}, {pipeline_mode = #tpu.pipeline_mode<synchronous>, transform_indices = @transform_1, window_bounds = array<i64: 8, 512>}, {pipeline_mode = #tpu.pipeline_mode<synchronous>, transform_indices = @transform_2, window_bounds = array<i64: 1, 512>}, {pipeline_mode = #tpu.pipeline_mode<synchronous>, transform_indices = @transform_3, window_bounds = array<i64: 512, 256>}, {pipeline_mode = #tpu.pipeline_mode<synchronous>, transform_indices = @transform_4, window_bounds = array<i64: 1, 256>}, {pipeline_mode = #tpu.pipeline_mode<synchronous>, transform_indices = @transform_5, window_bounds = array<i64: 1, 256>}, {pipeline_mode = #tpu.pipeline_mode<synchronous>, transform_indices = @transform_6, window_bounds = array<i64: 1, 8>}, {transform_indices = @transform_7, window_bounds = array<i64: 8, 8>}]} {
    %c0 = arith.constant 0 : index
    %c0_0 = arith.constant 0 : index
    %0 = vector.load %arg1[%c0, %c0_0] : memref<8x8xf32, #tpu.memory_space<vmem>>, vector<8x8xf32>
    %1 = arith.truncf %0 : vector<8x8xf32> to vector<8x8xbf16>
    %c0_1 = arith.constant 0 : index
    %c0_2 = arith.constant 0 : index
    %2 = vector.load %arg2[%c0_1, %c0_2] : memref<8x512xbf16, #tpu.memory_space<vmem>>, vector<8x512xbf16>
    %cst = arith.constant dense<0.000000e+00> : vector<8x512xf32>
    %3 = tpu.matmul %1, %2, %cst {dimension_numbers = #tpu.dot_dimension_numbers<[1], [0], [0], [1], [0, 0, 1, 1], [], []>} : vector<8x8xbf16>, vector<8x512xbf16>, vector<8x512xf32> -> vector<8x512xf32>
    %c0_3 = arith.constant 0 : index
    %c0_4 = arith.constant 0 : index
    %4 = vector.load %arg3[%c0_3, %c0_4] : memref<1x512xf32, #tpu.memory_space<vmem>>, vector<1x512xf32>
    %5 = vector.broadcast %4 : vector<1x512xf32> to vector<8x512xf32>
    %6 = arith.addf %3, %5 : vector<8x512xf32>
    %cst_5 = arith.constant 0.000000e+00 : f32
    %7 = vector.broadcast %cst_5 : f32 to vector<8x512xf32>
    %8 = arith.maximumf %6, %7 : vector<8x512xf32>
    %9 = arith.truncf %8 : vector<8x512xf32> to vector<8x512xbf16>
    %c0_6 = arith.constant 0 : index
    %c0_7 = arith.constant 0 : index
    %10 = vector.load %arg4[%c0_6, %c0_7] : memref<512x256xbf16, #tpu.memory_space<vmem>>, vector<512x256xbf16>
    %cst_8 = arith.constant dense<0.000000e+00> : vector<8x256xf32>
    %11 = tpu.matmul %9, %10, %cst_8 {dimension_numbers = #tpu.dot_dimension_numbers<[1], [0], [0], [1], [0, 0, 1, 1], [], []>} : vector<8x512xbf16>, vector<512x256xbf16>, vector<8x256xf32> -> vector<8x256xf32>
    %c0_9 = arith.constant 0 : index
    %c0_10 = arith.constant 0 : index
    %12 = vector.load %arg5[%c0_9, %c0_10] : memref<1x256xf32, #tpu.memory_space<vmem>>, vector<1x256xf32>
    %13 = vector.broadcast %12 : vector<1x256xf32> to vector<8x256xf32>
    %14 = arith.addf %11, %13 : vector<8x256xf32>
    %cst_11 = arith.constant 0.000000e+00 : f32
    %15 = vector.broadcast %cst_11 : f32 to vector<8x256xf32>
    %16 = arith.maximumf %14, %15 : vector<8x256xf32>
    %c0_12 = arith.constant 0 : index
    %c0_13 = arith.constant 0 : index
    %17 = vector.load %arg6[%c0_12, %c0_13] : memref<1x256xf32, #tpu.memory_space<vmem>>, vector<1x256xf32>
    %18 = vector.broadcast %17 : vector<1x256xf32> to vector<8x256xf32>
    %19 = arith.mulf %16, %18 : vector<8x256xf32>
    %cst_14 = arith.constant dense<0.000000e+00> : vector<8xf32>
    %20 = vector.multi_reduction <add>, %19, %cst_14 [1] : vector<8x256xf32> to vector<8xf32>
    %21 = vector.shape_cast %20 : vector<8xf32> to vector<8x1xf32>
    %c0_15 = arith.constant 0 : index
    %c0_16 = arith.constant 0 : index
    %22 = vector.load %arg7[%c0_15, %c0_16] : memref<1x8xf32, #tpu.memory_space<vmem>>, vector<1x8xf32>
    %23 = vector.broadcast %21 : vector<8x1xf32> to vector<8x8xf32>
    %24 = vector.broadcast %22 : vector<1x8xf32> to vector<8x8xf32>
    %25 = arith.addf %23, %24 : vector<8x8xf32>
    %c0_17 = arith.constant 0 : index
    %c0_18 = arith.constant 0 : index
    %26 = vector.load %arg8[%c0_17, %c0_18] : memref<8x8xf32, #tpu.memory_space<vmem>>, vector<8x8xf32>
    tpu.vector_store %arg8[%c0_17, %c0_18], %25 {strides = array<i32>} : memref<8x8xf32, #tpu.memory_space<vmem>>, vector<8x8xf32>,
    return
  }
  func.func @transform_0(%arg0: i32) -> (i32, i32) {
    %c0_i32 = arith.constant 0 : i32
    %c0_i32_0 = arith.constant 0 : i32
    return %arg0, %c0_i32 : i32, i32
  }
  func.func @transform_1(%arg0: i32) -> (i32, i32) {
    %c0_i32 = arith.constant 0 : i32
    %c0_i32_0 = arith.constant 0 : i32
    %c0_i32_1 = arith.constant 0 : i32
    return %c0_i32, %c0_i32_0 : i32, i32
  }
  func.func @transform_2(%arg0: i32) -> (i32, i32) {
    %c0_i32 = arith.constant 0 : i32
    %c0_i32_0 = arith.constant 0 : i32
    %c0_i32_1 = arith.constant 0 : i32
    return %c0_i32, %c0_i32_0 : i32, i32
  }
  func.func @transform_3(%arg0: i32) -> (i32, i32) {
    %c0_i32 = arith.constant 0 : i32
    %c0_i32_0 = arith.constant 0 : i32
    %c0_i32_1 = arith.constant 0 : i32
    return %c0_i32, %c0_i32_0 : i32, i32
  }
  func.func @transform_4(%arg0: i32) -> (i32, i32) {
    %c0_i32 = arith.constant 0 : i32
    %c0_i32_0 = arith.constant 0 : i32
    %c0_i32_1 = arith.constant 0 : i32
    return %c0_i32, %c0_i32_0 : i32, i32
  }
  func.func @transform_5(%arg0: i32) -> (i32, i32) {
    %c0_i32 = arith.constant 0 : i32
    %c0_i32_0 = arith.constant 0 : i32
    %c0_i32_1 = arith.constant 0 : i32
    return %c0_i32, %c0_i32_0 : i32, i32
  }
  func.func @transform_6(%arg0: i32) -> (i32, i32) {
    %c0_i32 = arith.constant 0 : i32
    %c0_i32_0 = arith.constant 0 : i32
    %c0_i32_1 = arith.constant 0 : i32
    return %c0_i32, %c0_i32_0 : i32, i32
  }
  func.func @transform_7(%arg0: i32) -> (i32, i32) {
    %c0_i32 = arith.constant 0 : i32
    %c0_i32_0 = arith.constant 0 : i32
    return %arg0, %c0_i32 : i32, i32
  }
}

</mosaic_0001>

<llo_original>
// kernel: tpu_custom_call.1
$region0: #{tpu_custom_call.1}
  #allocation0 [shape = 'u32[]', space=smem, size = 0x4, offset = 0x4, fixed_abs, tag = 'smem constant byte address 0x4 - core index']
  #allocation1 [shape = 'u32[144,128]{1,0:T(1,128)}', space=vmem, size = 0x12000, scoped, tag = 'internal scratch']
  %s0 = inlined_call_operand.hbm [shape: f32[8,8], index: 0, kind: input, shape index: {}]
  %s1 = inlined_call_operand.hbm [shape: bf16[8,512], index: 1, kind: input, shape index: {}]
  %s2 = inlined_call_operand.hbm [shape: f32[1,512], index: 2, kind: input, shape index: {}]
  %s3 = inlined_call_operand.hbm [shape: bf16[512,256], index: 3, kind: input, shape index: {}]
  %s4 = inlined_call_operand.vmem [shape: f32[1,256], index: 4, kind: input, shape index: {}]
  %s5 = inlined_call_operand.vmem [shape: f32[1,256], index: 5, kind: input, shape index: {}]
  %s6 = inlined_call_operand.vmem [shape: f32[1,8], index: 6, kind: input, shape index: {}]
  %s7 = inlined_call_operand.hbm [shape: f32[8,8], index: 7, kind: output, shape index: {}]
  %s8 = sld [smem:[#allocation0]]
  $region54: #{tpu_custom_call.1} parent=0
    _
  %s10 = ssub.s32 1, %s8
  %s11 = scalar_select 0, %s10, %s8
  $region1: #{tpu_custom_call.1} parent=0
    #allocation2 [shape = 'u8[4096]{0}', space=vmem, size = 0x1000, scoped, tag = 'input window, operand 0, single buffered']
    #allocation3 [shape = 's32[1]{0}', space=sflag, size = 0x4, scoped, tag = 'scoped memory for tpu_custom_call.1']
    #allocation4 [shape = 's32[1]{0}', space=sflag, size = 0x4, scoped, tag = 'scoped memory for tpu_custom_call.1']
    #allocation5 [shape = 'u8[8192]{0}', space=vmem, size = 0x2000, scoped, tag = 'input window, operand 1, single buffered']
    #allocation6 [shape = 's32[1]{0}', space=sflag, size = 0x4, scoped, tag = 'scoped memory for tpu_custom_call.1']
    #allocation7 [shape = 'u8[2048]{0}', space=vmem, size = 0x800, scoped, tag = 'input window, operand 2, single buffered']
    #allocation8 [shape = 'u8[262144]{0}', space=vmem, size = 0x40000, scoped, tag = 'input window, operand 3, single buffered']
    #allocation9 [shape = 's32[1]{0}', space=sflag, size = 0x4, scoped, tag = 'scoped memory for tpu_custom_call.1']
    #allocation10 [shape = 'u8[4096]{0}', space=vmem, size = 0x1000, scoped, tag = 'output window, operand 0, single buffered']
    %12 = vsyncpa [#allocation3], 0
    %13 = vsyncpa [#allocation6], 0
    %14 = vsyncpa [#allocation9], 0
    %15 = vsyncpa [#allocation4], 0
    // Predicated region
    $region2: #{tpu_custom_call.1} parent=1 // pred_check
      _
    $region3: #{tpu_custom_call.1} parent=1 // pred_check_branch
      %17 = sbr.rel (0) target = $region5
    $region4: #{tpu_custom_call.1} parent=1 // pred_region
      %s19 = ssub.s32 128, 128
      %20 = vsyncadd [#allocation3], %s19
      %s22 = sshll.u32 [#allocation2], 4
      %s23 = int_to_ptr.vmem [resolvable:$true] %s22
      %25 = dma.hbm_to_vmem [thread:$0]  %s0, 128, %s23, [#allocation3]
    $region5: #{tpu_custom_call.1} parent=1 // pred_fallthru
      _
    // Predicated region
    $region6: #{tpu_custom_call.1} parent=1 // pred_check
      _
    $region7: #{tpu_custom_call.1} parent=1 // pred_check_branch
      %27 = sbr.rel (0) target = $region9
    $region8: #{tpu_custom_call.1} parent=1 // pred_region
      %s29 = ssub.s32 256, 256
      %30 = vsyncadd [#allocation6], %s29
      %s32 = sshll.u32 [#allocation5], 4
      %s33 = int_to_ptr.vmem [resolvable:$true] %s32
      %35 = dma.hbm_to_vmem [thread:$0]  %s1, 256, %s33, [#allocation6]
    $region9: #{tpu_custom_call.1} parent=1 // pred_fallthru
      _
    // Predicated region
    $region10: #{tpu_custom_call.1} parent=1 // pred_check
      _
    $region11: #{tpu_custom_call.1} parent=1 // pred_check_branch
      %37 = sbr.rel (0) target = $region13
    $region12: #{tpu_custom_call.1} parent=1 // pred_region
      %s39 = ssub.s32 64, 64
      %40 = vsyncadd [#allocation6], %s39
      %s42 = sshll.u32 [#allocation7], 4
      %s43 = int_to_ptr.vmem [resolvable:$true] %s42
      %45 = dma.hbm_to_vmem [thread:$0]  %s2, 64, %s43, [#allocation6]
    $region13: #{tpu_custom_call.1} parent=1 // pred_fallthru
      _
    // Predicated region
    $region14: #{tpu_custom_call.1} parent=1 // pred_check
      _
    $region15: #{tpu_custom_call.1} parent=1 // pred_check_branch
      %47 = sbr.rel (0) target = $region17
    $region16: #{tpu_custom_call.1} parent=1 // pred_region
      %s49 = ssub.s32 8192, 8192
      %50 = vsyncadd [#allocation9], %s49
      %s51 = sshll.u32 [#allocation8], 4
      %s52 = int_to_ptr.vmem [resolvable:$true] %s51
      %57 = dma.hbm_to_vmem [thread:$0]  %s3, 8192, %s52, [#allocation9], 128, 128, 8
    $region17: #{tpu_custom_call.1} parent=1 // pred_fallthru
      _
    // Predicated region
    $region18: #{tpu_custom_call.1} parent=1 // pred_check
      _
    $region19: #{tpu_custom_call.1} parent=1 // pred_check_branch
      %59 = sbr.rel (0) target = $region21
    $region20: #{tpu_custom_call.1} parent=1 // pred_region
      _
    $region21: #{tpu_custom_call.1} parent=1 // pred_fallthru
      _
    // Predicated region
    $region22: #{tpu_custom_call.1} parent=1 // pred_check
      _
    $region23: #{tpu_custom_call.1} parent=1 // pred_check_branch
      %61 = sbr.rel (0) target = $region25
    $region24: #{tpu_custom_call.1} parent=1 // pred_region
      _
    $region25: #{tpu_custom_call.1} parent=1 // pred_fallthru
      _
    // Predicated region
    $region26: #{tpu_custom_call.1} parent=1 // pred_check
      _
    $region27: #{tpu_custom_call.1} parent=1 // pred_check_branch
      %63 = sbr.rel (0) target = $region29
    $region28: #{tpu_custom_call.1} parent=1 // pred_region
      _
    $region29: #{tpu_custom_call.1} parent=1 // pred_fallthru
      _
    // Predicated region
    $region30: #{tpu_custom_call.1} parent=1 // pred_check
      _
    $region31: #{tpu_custom_call.1} parent=1 // pred_check_branch
      %65 = sbr.rel (0) target = $region33
    $region32: #{tpu_custom_call.1} parent=1 // pred_region
      %66 = dma.done [#allocation3], 128
    $region33: #{tpu_custom_call.1} parent=1 // pred_fallthru
      _
    // Predicated region
    $region34: #{tpu_custom_call.1} parent=1 // pred_check
      _
    $region35: #{tpu_custom_call.1} parent=1 // pred_check_branch
      %68 = sbr.rel (0) target = $region37
    $region36: #{tpu_custom_call.1} parent=1 // pred_region
      %69 = dma.done [#allocation6], 256
    $region37: #{tpu_custom_call.1} parent=1 // pred_fallthru
      _
    // Predicated region
    $region38: #{tpu_custom_call.1} parent=1 // pred_check
      _
    $region39: #{tpu_custom_call.1} parent=1 // pred_check_branch
      %71 = sbr.rel (0) target = $region41
    $region40: #{tpu_custom_call.1} parent=1 // pred_region
      %72 = dma.done [#allocation6], 64
    $region41: #{tpu_custom_call.1} parent=1 // pred_fallthru
      _
    // Predicated region
    $region42: #{tpu_custom_call.1} parent=1 // pred_check
      _
    $region43: #{tpu_custom_call.1} parent=1 // pred_check_branch
      %74 = sbr.rel (0) target = $region45
    $region44: #{tpu_custom_call.1} parent=1 // pred_region
      %75 = dma.done [#allocation9], 8192
    $region45: #{tpu_custom_call.1} parent=1 // pred_fallthru
      _
    %v77 = vld [vmem:[#allocation2] sm:$0xff]
    %v78 = vpack.c.bf16 %v77, %v77
    %v79 = vld [vmem:[#allocation5] sm:$0xff]
    %v80 = vld [vmem:[#allocation5 + $0x8] sm:$0xff]
    %v81 = vld [vmem:[#allocation7] sm:$0xf]
    %v83 = vlaneseq
    %v84 = vshrl.u32 %v83, 7
    %v85 = vsub.s32 0, %v84
    %v86 = vrot.slane %v81, %v85
    %v87 = vlaneseq
    %v88 = vshrl.u32 %v87, 7
    %v89 = vsub.s32 1, %v88
    %v90 = vrot.slane %v81, %v89
    %v91 = vlaneseq
    %v92 = vshrl.u32 %v91, 7
    %v93 = vsub.s32 2, %v92
    %v94 = vrot.slane %v81, %v93
    %v95 = vlaneseq
    %v96 = vshrl.u32 %v95, 7
    %v97 = vsub.s32 3, %v96
    %v98 = vrot.slane %v81, %v97
    %v105 = vunpack.c.l.b16 %v79
    %v106 = vunpack.c.h.b16 %v79
    %v107 = vunpack.c.l.b16 %v80
    %v108 = vunpack.c.h.b16 %v80
    %v109 = vpack.c.b16 %v105, %v105
    %v110 = vpack.c.b16 %v106, %v106
    %v111 = vpack.c.b16 %v107, %v107
    %v112 = vpack.c.b16 %v108, %v108
    %vm113 = vcmask 64512
    %v115 = vsel %vm113, %v78, 0
    %vm117 = vcmask 1043456
    %v119 = vsel %vm117, %v109, 0
    %v122 = vsel %vm117, %v110, 0
    %v125 = vsel %vm117, %v111, 0
    %v128 = vsel %vm117, %v112, 0
    %130 = vmatprep.subr.bf16.mxu0 0
    %131 = vmatpush1.bf16.msra.mxu0 0
    %132 = vmatprep.subr.bf16.mxu0 0
    %133 = vmatpush1.bf16.msra.mxu0 0
    %134 = vmatprep.subr.bf16.mxu0 0
    %135 = vmatpush1.bf16.msra.mxu0 0
    %136 = vmatprep.subr.bf16.mxu0 0
    %137 = vmatpush1.bf16.msra.mxu0 0
    %138 = vmatprep.subr.bf16.mxu0 0
    %139 = vmatpush1.bf16.msra.mxu0 0
    %140 = vmatprep.subr.bf16.mxu0 0
    %141 = vmatpush1.bf16.msra.mxu0 0
    %142 = vmatprep.subr.bf16.mxu0 0
    %143 = vmatpush1.bf16.msra.mxu0 0
    %144 = vmatprep.subr.bf16.mxu0 %v122
    %145 = vmatpush1.bf16.msra.mxu0 %v119
    %146 = vmatprep.subr.bf16.mxu0 0
    %147 = vmatpush2.bf16.msra.mxu0 0
    %148 = vmatprep.subr.bf16.mxu0 0
    %149 = vmatpush2.bf16.msra.mxu0 0
    %150 = vmatprep.subr.bf16.mxu0 0
    %151 = vmatpush2.bf16.msra.mxu0 0
    %152 = vmatprep.subr.bf16.mxu0 0
    %153 = vmatpush2.bf16.msra.mxu0 0
    %154 = vmatprep.subr.bf16.mxu0 0
    %155 = vmatpush2.bf16.msra.mxu0 0
    %156 = vmatprep.subr.bf16.mxu0 0
    %157 = vmatpush2.bf16.msra.mxu0 0
    %158 = vmatprep.subr.bf16.mxu0 0
    %159 = vmatpush2.bf16.msra.mxu0 0
    %160 = vmatprep.subr.bf16.mxu0 0
    %161 = vmatpush2.bf16.msra.mxu0 0
    %162 = vmatprep.mubr.bf16.mxu0 0
    %163 = vmatmul.mubr.bf16.gmra.mxu0 %v115
    %v164 = vpop.f32.mrf.mxu0
    %v165 = vadd.f32 %v86, %v164
    %v166 = vpop.f32.mrf.mxu0
    %v167 = vadd.f32 %v90, %v166
    %v168 = vpop.f32.mrf.mxu0
    %v169 = vpop.f32.mrf.mxu0
    %170 = vdwg.mxu0
    %171 = vmatprep.subr.bf16.mxu0 0
    %172 = vmatpush1.bf16.msra.mxu0 0
    %173 = vmatprep.subr.bf16.mxu0 0
    %174 = vmatpush1.bf16.msra.mxu0 0
    %175 = vmatprep.subr.bf16.mxu0 0
    %176 = vmatpush1.bf16.msra.mxu0 0
    %177 = vmatprep.subr.bf16.mxu0 0
    %178 = vmatpush1.bf16.msra.mxu0 0
    %179 = vmatprep.subr.bf16.mxu0 0
    %180 = vmatpush1.bf16.msra.mxu0 0
    %181 = vmatprep.subr.bf16.mxu0 0
    %182 = vmatpush1.bf16.msra.mxu0 0
    %183 = vmatprep.subr.bf16.mxu0 0
    %184 = vmatpush1.bf16.msra.mxu0 0
    %185 = vmatprep.subr.bf16.mxu0 %v128
    %186 = vmatpush1.bf16.msra.mxu0 %v125
    %187 = vmatprep.subr.bf16.mxu0 0
    %188 = vmatpush2.bf16.msra.mxu0 0
    %189 = vmatprep.subr.bf16.mxu0 0
    %190 = vmatpush2.bf16.msra.mxu0 0
    %191 = vmatprep.subr.bf16.mxu0 0
    %192 = vmatpush2.bf16.msra.mxu0 0
    %193 = vmatprep.subr.bf16.mxu0 0
    %194 = vmatpush2.bf16.msra.mxu0 0
    %195 = vmatprep.subr.bf16.mxu0 0
    %196 = vmatpush2.bf16.msra.mxu0 0
    %197 = vmatprep.subr.bf16.mxu0 0
    %198 = vmatpush2.bf16.msra.mxu0 0
    %199 = vmatprep.subr.bf16.mxu0 0
    %200 = vmatpush2.bf16.msra.mxu0 0
    %201 = vmatprep.subr.bf16.mxu0 0
    %202 = vmatpush2.bf16.msra.mxu0 0
    %203 = vmatprep.mubr.bf16.mxu0 0
    %204 = vmatmul.mubr.bf16.gmra.mxu0 %v115
    %v205 = vpop.f32.mrf.mxu0
    %v206 = vadd.f32 %v94, %v205
    %v207 = vpop.f32.mrf.mxu0
    %v208 = vadd.f32 %v98, %v207
    %v209 = vpop.f32.mrf.mxu0
    %v210 = vpop.f32.mrf.mxu0
    %211 = vdwg.mxu0
    %v212 = vmax.f32 %v165, 0.0
    %v213 = vmax.f32 %v167, 0.0
    %v214 = vmax.f32 %v206, 0.0
    %v215 = vmax.f32 %v208, 0.0
    %v216 = vpack.c.bf16 %v212, %v212
    %v217 = vpack.c.bf16 %v213, %v213
    %v218 = vpack.c.bf16 %v214, %v214
    %v219 = vpack.c.bf16 %v215, %v215
    %v220 = vld [vmem:[#allocation8] sm:$0xff]
    %v221 = vld [vmem:[#allocation8 + $0x8] sm:$0xff]
    %v222 = vld [vmem:[#allocation8 + $0x10] sm:$0xff]
    %v223 = vld [vmem:[#allocation8 + $0x18] sm:$0xff]
    %v224 = vld [vmem:[#allocation8 + $0x20] sm:$0xff]
    %v225 = vld [vmem:[#allocation8 + $0x28] sm:$0xff]
    %v226 = vld [vmem:[#allocation8 + $0x30] sm:$0xff]
    %v227 = vld [vmem:[#allocation8 + $0x38] sm:$0xff]
    %v228 = vld [vmem:[#allocation8 + $0x40] sm:$0xff]
    %v229 = vld [vmem:[#allocation8 + $0x48] sm:$0xff]
    %v230 = vld [vmem:[#allocation8 + $0x50] sm:$0xff]
    %v231 = vld [vmem:[#allocation8 + $0x58] sm:$0xff]
    %v232 = vld [vmem:[#allocation8 + $0x60] sm:$0xff]
    %v233 = vld [vmem:[#allocation8 + $0x68] sm:$0xff]
    %v234 = vld [vmem:[#allocation8 + $0x70] sm:$0xff]
    %v235 = vld [vmem:[#allocation8 + $0x78] sm:$0xff]
    %v236 = vld [vmem:[#allocation8 + $0x80] sm:$0xff]
    %v237 = vld [vmem:[#allocation8 + $0x88] sm:$0xff]
    %v238 = vld [vmem:[#allocation8 + $0x90] sm:$0xff]
    %v239 = vld [vmem:[#allocation8 + $0x98] sm:$0xff]
    %v240 = vld [vmem:[#allocation8 + $0xa0] sm:$0xff]
    %v241 = vld [vmem:[#allocation8 + $0xa8] sm:$0xff]
    %v242 = vld [vmem:[#allocation8 + $0xb0] sm:$0xff]
    %v243 = vld [vmem:[#allocation8 + $0xb8] sm:$0xff]
    %v244 = vld [vmem:[#allocation8 + $0xc0] sm:$0xff]
    %v245 = vld [vmem:[#allocation8 + $0xc8] sm:$0xff]
    %v246 = vld [vmem:[#allocation8 + $0xd0] sm:$0xff]
    %v247 = vld [vmem:[#allocation8 + $0xd8] sm:$0xff]
    %v248 = vld [vmem:[#allocation8 + $0xe0] sm:$0xff]
    %v249 = vld [vmem:[#allocation8 + $0xe8] sm:$0xff]
    %v250 = vld [vmem:[#allocation8 + $0xf0] sm:$0xff]
    %v251 = vld [vmem:[#allocation8 + $0xf8] sm:$0xff]
    %v252 = vld [vmem:[#allocation8 + $0x100] sm:$0xff]
    %v253 = vld [vmem:[#allocation8 + $0x108] sm:$0xff]
    %v254 = vld [vmem:[#allocation8 + $0x110] sm:$0xff]
    %v255 = vld [vmem:[#allocation8 + $0x118] sm:$0xff]
    %v256 = vld [vmem:[#allocation8 + $0x120] sm:$0xff]
    %v257 = vld [vmem:[#allocation8 + $0x128] sm:$0xff]
    %v258 = vld [vmem:[#allocation8 + $0x130] sm:$0xff]
    %v259 = vld [vmem:[#allocation8 + $0x138] sm:$0xff]
    %v260 = vld [vmem:[#allocation8 + $0x140] sm:$0xff]
    %v261 = vld [vmem:[#allocation8 + $0x148] sm:$0xff]
    %v262 = vld [vmem:[#allocation8 + $0x150] sm:$0xff]
    %v263 = vld [vmem:[#allocation8 + $0x158] sm:$0xff]
    %v264 = vld [vmem:[#allocation8 + $0x160] sm:$0xff]
    %v265 = vld [vmem:[#allocation8 + $0x168] sm:$0xff]
    %v266 = vld [vmem:[#allocation8 + $0x170] sm:$0xff]
    %v267 = vld [vmem:[#allocation8 + $0x178] sm:$0xff]
    %v268 = vld [vmem:[#allocation8 + $0x180] sm:$0xff]
    %v269 = vld [vmem:[#allocation8 + $0x188] sm:$0xff]
    %v270 = vld [vmem:[#allocation8 + $0x190] sm:$0xff]
    %v271 = vld [vmem:[#allocation8 + $0x198] sm:$0xff]
    %v272 = vld [vmem:[#allocation8 + $0x1a0] sm:$0xff]
    %v273 = vld [vmem:[#allocation8 + $0x1a8] sm:$0xff]
    %v274 = vld [vmem:[#allocation8 + $0x1b0] sm:$0xff]
    %v275 = vld [vmem:[#allocation8 + $0x1b8] sm:$0xff]
    %v276 = vld [vmem:[#allocation8 + $0x1c0] sm:$0xff]
    %v277 = vld [vmem:[#allocation8 + $0x1c8] sm:$0xff]
    %v278 = vld [vmem:[#allocation8 + $0x1d0] sm:$0xff]
    %v279 = vld [vmem:[#allocation8 + $0x1d8] sm:$0xff]
    %v280 = vld [vmem:[#allocation8 + $0x1e0] sm:$0xff]
    %v281 = vld [vmem:[#allocation8 + $0x1e8] sm:$0xff]
    %v282 = vld [vmem:[#allocation8 + $0x1f0] sm:$0xff]
    %v283 = vld [vmem:[#allocation8 + $0x1f8] sm:$0xff]
    %v284 = vld [vmem:[%s4] sm:$0x3]
    %v286 = vlaneseq
    %v287 = vshrl.u32 %v286, 7
    %v288 = vsub.s32 0, %v287
    %v289 = vrot.slane %v284, %v288
    %v290 = vlaneseq
    %v291 = vshrl.u32 %v290, 7
    %v292 = vsub.s32 1, %v291
    %v293 = vrot.slane %v284, %v292
    %v360 = vunpack.c.l.b16 %v220
    %v361 = vunpack.c.h.b16 %v220
    %v362 = vunpack.c.l.b16 %v221
    %v363 = vunpack.c.h.b16 %v221
    %v364 = vunpack.c.l.b16 %v222
    %v365 = vunpack.c.h.b16 %v222
    %v366 = vunpack.c.l.b16 %v223
    %v367 = vunpack.c.h.b16 %v223
    %v368 = vunpack.c.l.b16 %v224
    %v369 = vunpack.c.h.b16 %v224
    %v370 = vunpack.c.l.b16 %v225
    %v371 = vunpack.c.h.b16 %v225
    %v372 = vunpack.c.l.b16 %v226
    %v373 = vunpack.c.h.b16 %v226
    %v374 = vunpack.c.l.b16 %v227
    %v375 = vunpack.c.h.b16 %v227
    %v376 = vunpack.c.l.b16 %v228
    %v377 = vunpack.c.h.b16 %v228
    %v378 = vunpack.c.l.b16 %v229
    %v379 = vunpack.c.h.b16 %v229
    %v380 = vunpack.c.l.b16 %v230
    %v381 = vunpack.c.h.b16 %v230
    %v382 = vunpack.c.l.b16 %v231
    %v383 = vunpack.c.h.b16 %v231
    %v384 = vunpack.c.l.b16 %v232
    %v385 = vunpack.c.h.b16 %v232
    %v386 = vunpack.c.l.b16 %v233
    %v387 = vunpack.c.h.b16 %v233
    %v388 = vunpack.c.l.b16 %v234
    %v389 = vunpack.c.h.b16 %v234
    %v390 = vunpack.c.l.b16 %v235
    %v391 = vunpack.c.h.b16 %v235
    %v392 = vunpack.c.l.b16 %v236
    %v393 = vunpack.c.h.b16 %v236
    %v394 = vunpack.c.l.b16 %v237
    %v395 = vunpack.c.h.b16 %v237
    %v396 = vunpack.c.l.b16 %v238
    %v397 = vunpack.c.h.b16 %v238
    %v398 = vunpack.c.l.b16 %v239
    %v399 = vunpack.c.h.b16 %v239
    %v400 = vunpack.c.l.b16 %v240
    %v401 = vunpack.c.h.b16 %v240
    %v402 = vunpack.c.l.b16 %v241
    %v403 = vunpack.c.h.b16 %v241
    %v404 = vunpack.c.l.b16 %v242
    %v405 = vunpack.c.h.b16 %v242
    %v406 = vunpack.c.l.b16 %v243
    %v407 = vunpack.c.h.b16 %v243
    %v408 = vunpack.c.l.b16 %v244
    %v409 = vunpack.c.h.b16 %v244
    %v410 = vunpack.c.l.b16 %v245
    %v411 = vunpack.c.h.b16 %v245
    %v412 = vunpack.c.l.b16 %v246
    %v413 = vunpack.c.h.b16 %v246
    %v414 = vunpack.c.l.b16 %v247
    %v415 = vunpack.c.h.b16 %v247
    %v416 = vunpack.c.l.b16 %v248
    %v417 = vunpack.c.h.b16 %v248
    %v418 = vunpack.c.l.b16 %v249
    %v419 = vunpack.c.h.b16 %v249
    %v420 = vunpack.c.l.b16 %v250
    %v421 = vunpack.c.h.b16 %v250
    %v422 = vunpack.c.l.b16 %v251
    %v423 = vunpack.c.h.b16 %v251
    %v424 = vunpack.c.l.b16 %v252
    %v425 = vunpack.c.h.b16 %v252
    %v426 = vunpack.c.l.b16 %v253
    %v427 = vunpack.c.h.b16 %v253
    %v428 = vunpack.c.l.b16 %v254
    %v429 = vunpack.c.h.b16 %v254
    %v430 = vunpack.c.l.b16 %v255
    %v431 = vunpack.c.h.b16 %v255
    %v432 = vunpack.c.l.b16 %v256
    %v433 = vunpack.c.h.b16 %v256
    %v434 = vunpack.c.l.b16 %v257
    %v435 = vunpack.c.h.b16 %v257
    %v436 = vunpack.c.l.b16 %v258
    %v437 = vunpack.c.h.b16 %v258
    %v438 = vunpack.c.l.b16 %v259
    %v439 = vunpack.c.h.b16 %v259
    %v440 = vunpack.c.l.b16 %v260
    %v441 = vunpack.c.h.b16 %v260
    %v442 = vunpack.c.l.b16 %v261
    %v443 = vunpack.c.h.b16 %v261
    %v444 = vunpack.c.l.b16 %v262
    %v445 = vunpack.c.h.b16 %v262
    %v446 = vunpack.c.l.b16 %v263
    %v447 = vunpack.c.h.b16 %v263
    %v448 = vunpack.c.l.b16 %v264
    %v449 = vunpack.c.h.b16 %v264
    %v450 = vunpack.c.l.b16 %v265
    %v451 = vunpack.c.h.b16 %v265
    %v452 = vunpack.c.l.b16 %v266
    %v453 = vunpack.c.h.b16 %v266
    %v454 = vunpack.c.l.b16 %v267
    %v455 = vunpack.c.h.b16 %v267
    %v456 = vunpack.c.l.b16 %v268
    %v457 = vunpack.c.h.b16 %v268
    %v458 = vunpack.c.l.b16 %v269
    %v459 = vunpack.c.h.b16 %v269
    %v460 = vunpack.c.l.b16 %v270
    %v461 = vunpack.c.h.b16 %v270
    %v462 = vunpack.c.l.b16 %v271
    %v463 = vunpack.c.h.b16 %v271
    %v464 = vunpack.c.l.b16 %v272
    %v465 = vunpack.c.h.b16 %v272
    %v466 = vunpack.c.l.b16 %v273
    %v467 = vunpack.c.h.b16 %v273
    %v468 = vunpack.c.l.b16 %v274
    %v469 = vunpack.c.h.b16 %v274
    %v470 = vunpack.c.l.b16 %v275
    %v471 = vunpack.c.h.b16 %v275
    %v472 = vunpack.c.l.b16 %v276
    %v473 = vunpack.c.h.b16 %v276
    %v474 = vunpack.c.l.b16 %v277
    %v475 = vunpack.c.h.b16 %v277
    %v476 = vunpack.c.l.b16 %v278
    %v477 = vunpack.c.h.b16 %v278
    %v478 = vunpack.c.l.b16 %v279
    %v479 = vunpack.c.h.b16 %v279
    %v480 = vunpack.c.l.b16 %v280
    %v481 = vunpack.c.h.b16 %v280
    %v482 = vunpack.c.l.b16 %v281
    %v483 = vunpack.c.h.b16 %v281
    %v484 = vunpack.c.l.b16 %v282
    %v485 = vunpack.c.h.b16 %v282
    %v486 = vunpack.c.l.b16 %v283
    %v487 = vunpack.c.h.b16 %v283
    %v488 = vpack.c.b16 %v362, %v360
    %v489 = vpack.c.b16 %v363, %v361
    %v490 = vpack.c.b16 %v366, %v364
    %v491 = vpack.c.b16 %v367, %v365
    %v492 = vpack.c.b16 %v370, %v368
    %v493 = vpack.c.b16 %v371, %v369
    %v494 = vpack.c.b16 %v374, %v372
    %v495 = vpack.c.b16 %v375, %v373
    %v496 = vpack.c.b16 %v378, %v376
    %v497 = vpack.c.b16 %v379, %v377
    %v498 = vpack.c.b16 %v382, %v380
    %v499 = vpack.c.b16 %v383, %v381
    %v500 = vpack.c.b16 %v386, %v384
    %v501 = vpack.c.b16 %v387, %v385
    %v502 = vpack.c.b16 %v390, %v388
    %v503 = vpack.c.b16 %v391, %v389
    %v504 = vpack.c.b16 %v394, %v392
    %v505 = vpack.c.b16 %v395, %v393
    %v506 = vpack.c.b16 %v398, %v396
    %v507 = vpack.c.b16 %v399, %v397
    %v508 = vpack.c.b16 %v402, %v400
    %v509 = vpack.c.b16 %v403, %v401
    %v510 = vpack.c.b16 %v406, %v404
    %v511 = vpack.c.b16 %v407, %v405
    %v512 = vpack.c.b16 %v410, %v408
    %v513 = vpack.c.b16 %v411, %v409
    %v514 = vpack.c.b16 %v414, %v412
    %v515 = vpack.c.b16 %v415, %v413
    %v516 = vpack.c.b16 %v418, %v416
    %v517 = vpack.c.b16 %v419, %v417
    %v518 = vpack.c.b16 %v422, %v420
    %v519 = vpack.c.b16 %v423, %v421
    %v520 = vpack.c.b16 %v426, %v424
    %v521 = vpack.c.b16 %v427, %v425
    %v522 = vpack.c.b16 %v430, %v428
    %v523 = vpack.c.b16 %v431, %v429
    %v524 = vpack.c.b16 %v434, %v432
    %v525 = vpack.c.b16 %v435, %v433
    %v526 = vpack.c.b16 %v438, %v436
    %v527 = vpack.c.b16 %v439, %v437
    %v528 = vpack.c.b16 %v442, %v440
    %v529 = vpack.c.b16 %v443, %v441
    %v530 = vpack.c.b16 %v446, %v444
    %v531 = vpack.c.b16 %v447, %v445
    %v532 = vpack.c.b16 %v450, %v448
    %v533 = vpack.c.b16 %v451, %v449
    %v534 = vpack.c.b16 %v454, %v452
    %v535 = vpack.c.b16 %v455, %v453
    %v536 = vpack.c.b16 %v458, %v456
    %v537 = vpack.c.b16 %v459, %v457
    %v538 = vpack.c.b16 %v462, %v460
    %v539 = vpack.c.b16 %v463, %v461
    %v540 = vpack.c.b16 %v466, %v464
    %v541 = vpack.c.b16 %v467, %v465
    %v542 = vpack.c.b16 %v470, %v468
    %v543 = vpack.c.b16 %v471, %v469
    %v544 = vpack.c.b16 %v474, %v472
    %v545 = vpack.c.b16 %v475, %v473
    %v546 = vpack.c.b16 %v478, %v476
    %v547 = vpack.c.b16 %v479, %v477
    %v548 = vpack.c.b16 %v482, %v480
    %v549 = vpack.c.b16 %v483, %v481
    %v550 = vpack.c.b16 %v486, %v484
    %v551 = vpack.c.b16 %v487, %v485
    %616 = vmatprep.subr.bf16.mxu0 %v503
    %617 = vmatpush1.bf16.msra.mxu0 %v502
    %618 = vmatprep.subr.bf16.mxu0 %v501
    %619 = vmatpush1.bf16.msra.mxu0 %v500
    %620 = vmatprep.subr.bf16.mxu0 %v499
    %621 = vmatpush1.bf16.msra.mxu0 %v498
    %622 = vmatprep.subr.bf16.mxu0 %v497
    %623 = vmatpush1.bf16.msra.mxu0 %v496
    %624 = vmatprep.subr.bf16.mxu0 %v495
    %625 = vmatpush1.bf16.msra.mxu0 %v494
    %626 = vmatprep.subr.bf16.mxu0 %v493
    %627 = vmatpush1.bf16.msra.mxu0 %v492
    %628 = vmatprep.subr.bf16.mxu0 %v491
    %629 = vmatpush1.bf16.msra.mxu0 %v490
    %630 = vmatprep.subr.bf16.mxu0 %v489
    %631 = vmatpush1.bf16.msra.mxu0 %v488
    %632 = vmatprep.subr.bf16.mxu0 %v519
    %633 = vmatpush2.bf16.msra.mxu0 %v518
    %634 = vmatprep.subr.bf16.mxu0 %v517
    %635 = vmatpush2.bf16.msra.mxu0 %v516
    %636 = vmatprep.subr.bf16.mxu0 %v515
    %637 = vmatpush2.bf16.msra.mxu0 %v514
    %638 = vmatprep.subr.bf16.mxu0 %v513
    %639 = vmatpush2.bf16.msra.mxu0 %v512
    %640 = vmatprep.subr.bf16.mxu0 %v511
    %641 = vmatpush2.bf16.msra.mxu0 %v510
    %642 = vmatprep.subr.bf16.mxu0 %v509
    %643 = vmatpush2.bf16.msra.mxu0 %v508
    %644 = vmatprep.subr.bf16.mxu0 %v507
    %645 = vmatpush2.bf16.msra.mxu0 %v506
    %646 = vmatprep.subr.bf16.mxu0 %v505
    %647 = vmatpush2.bf16.msra.mxu0 %v504
    %648 = vmatprep.mubr.bf16.mxu0 %v217
    %649 = vmatmul.mubr.bf16.gmra.mxu0 %v216
    %v650 = vpop.f32.mrf.mxu0
    %v651 = vadd.f32 %v289, %v650
    %v652 = vpop.f32.mrf.mxu0
    %v653 = vadd.f32 %v293, %v652
    %v654 = vpop.f32.mrf.mxu0
    %v655 = vpop.f32.mrf.mxu0
    %656 = vdwg.mxu0
    %657 = vmatprep.subr.bf16.mxu0 %v535
    %658 = vmatpush1.bf16.msra.mxu0 %v534
    %659 = vmatprep.subr.bf16.mxu0 %v533
    %660 = vmatpush1.bf16.msra.mxu0 %v532
    %661 = vmatprep.subr.bf16.mxu0 %v531
    %662 = vmatpush1.bf16.msra.mxu0 %v530
    %663 = vmatprep.subr.bf16.mxu0 %v529
    %664 = vmatpush1.bf16.msra.mxu0 %v528
    %665 = vmatprep.subr.bf16.mxu0 %v527
    %666 = vmatpush1.bf16.msra.mxu0 %v526
    %667 = vmatprep.subr.bf16.mxu0 %v525
    %668 = vmatpush1.bf16.msra.mxu0 %v524
    %669 = vmatprep.subr.bf16.mxu0 %v523
    %670 = vmatpush1.bf16.msra.mxu0 %v522
    %671 = vmatprep.subr.bf16.mxu0 %v521
    %672 = vmatpush1.bf16.msra.mxu0 %v520
    %673 = vmatprep.subr.bf16.mxu0 %v551
    %674 = vmatpush2.bf16.msra.mxu0 %v550
    %675 = vmatprep.subr.bf16.mxu0 %v549
    %676 = vmatpush2.bf16.msra.mxu0 %v548
    %677 = vmatprep.subr.bf16.mxu0 %v547
    %678 = vmatpush2.bf16.msra.mxu0 %v546
    %679 = vmatprep.subr.bf16.mxu0 %v545
    %680 = vmatpush2.bf16.msra.mxu0 %v544
    %681 = vmatprep.subr.bf16.mxu0 %v543
    %682 = vmatpush2.bf16.msra.mxu0 %v542
    %683 = vmatprep.subr.bf16.mxu0 %v541
    %684 = vmatpush2.bf16.msra.mxu0 %v540
    %685 = vmatprep.subr.bf16.mxu0 %v539
    %686 = vmatpush2.bf16.msra.mxu0 %v538
    %687 = vmatprep.subr.bf16.mxu0 %v537
    %688 = vmatpush2.bf16.msra.mxu0 %v536
    %689 = vmatprep.mubr.bf16.mxu0 %v219
    %690 = vmatmul.mubr.bf16.gmra.mxu0 %v218
    %v691 = vpop.f32.mrf.mxu0
    %v692 = vadd.f32 %v651, %v691
    %v693 = vpop.f32.mrf.mxu0
    %v694 = vadd.f32 %v653, %v693
    %v695 = vpop.f32.mrf.mxu0
    %v696 = vpop.f32.mrf.mxu0
    %697 = vdwg.mxu0
    %v698 = vmax.f32 %v692, 0.0
    %v699 = vmax.f32 %v694, 0.0
    %v700 = vld [vmem:[%s5] sm:$0x3]
    %v702 = vlaneseq
    %v703 = vshrl.u32 %v702, 7
    %v704 = vsub.s32 0, %v703
    %v705 = vrot.slane %v700, %v704
    %v706 = vlaneseq
    %v707 = vshrl.u32 %v706, 7
    %v708 = vsub.s32 1, %v707
    %v709 = vrot.slane %v700, %v708
    %v712 = vmul.f32 %v698, %v705
    %v713 = vmul.f32 %v699, %v709
    %v714 = vadd.f32 %v712, %v713
    %715 = vadd.xlane.f32.xlu0 %v714
    %v716 = vpop.xlane.xlu0 %715
    %v717 = vld [vmem:[%s6] sm:$0x1]
    %v719 = vlaneseq
    %v720 = vshrl.u32 %v719, 7
    %v721 = vsub.s32 0, %v720
    %v722 = vrot.slane %v717, %v721
    %v724 = vadd.f32 %v716, %v722
    %725 = vst.msk [vmem:[#allocation10] sm:$0xff] %vm113, %v724
    // Predicated region
    $region46: #{tpu_custom_call.1} parent=1 // pred_check
      _
    $region47: #{tpu_custom_call.1} parent=1 // pred_check_branch
      %727 = sbr.rel (0) target = $region49
    $region48: #{tpu_custom_call.1} parent=1 // pred_region
      %s729 = ssub.s32 128, 128
      %730 = vsyncadd [#allocation4], %s729
      %s732 = sshll.u32 [#allocation10], 4
      %s733 = int_to_ptr.vmem [resolvable:$true] %s732
      %735 = dma.vmem_to_hbm [thread:$0]  %s733, 128, %s7, [#allocation4]
    $region49: #{tpu_custom_call.1} parent=1 // pred_fallthru
      _
    // Predicated region
    $region50: #{tpu_custom_call.1} parent=1 // pred_check
      _
    $region51: #{tpu_custom_call.1} parent=1 // pred_check_branch
      %737 = sbr.rel (0) target = $region53
    $region52: #{tpu_custom_call.1} parent=1 // pred_region
      %738 = dma.done [#allocation4], 128
    $region53: #{tpu_custom_call.1} parent=1 // pred_fallthru
      _
    %739 = vsyncpa [#allocation3], 1
    %740 = vsyncpa [#allocation6], 1
    %741 = vsyncpa [#allocation9], 1
    %742 = vsyncpa [#allocation4], 1

</llo_original>
